<compile_context>
chip_gen: v7x
topology: tpu7x:2x2x1
jax: 0.10.0
libtpu: 0.0.40
codegen_flags: <defaults>
</compile_context>

<pallas_src>
import jax
import jax.numpy as jnp
from jax.experimental import pallas as pl
from jax.experimental.pallas import tpu as pltpu


BYTE_BUDGET = 4 * 1024 * 1024        # ~4 MiB per pipeline buffer
PALLAS_MIN_ELEMS = 1 << 18           # below this, plain JAX beats a kernel launch
LANES = 128


def _lambda_kernel(x_ref, o_ref):
    # The "lambd": elementwise x * 2.0 + 1.0 (representative elementwise lambda).
    x = x_ref[...]
    o_ref[...] = (x * 2.0 + 1.0).astype(o_ref.dtype)


def _sublane_multiple(dtype) -> int:
    itemsize = jnp.dtype(dtype).itemsize
    return {4: 8, 2: 16, 1: 32}.get(itemsize, 8)


def _round_up(a: int, m: int) -> int:
    return ((a + m - 1) // m) * m


def _pick_width(total: int):
    """Widest multiple-of-128 lane dim that divides total (None if ragged)."""
    for w in (1024, 512, 256, 128):
        if total % w == 0:
            return w
    return None


def _run_pallas_2d(x2d: jax.Array) -> jax.Array:
    """Stream a lane-dense (rows, width) slab through the elementwise kernel."""
    rows, width = x2d.shape
    dtype = x2d.dtype
    itemsize = jnp.dtype(dtype).itemsize
    sub = _sublane_multiple(dtype)

    # Byte-budgeted block rows (dtype-aware), rounded down to the sublane multiple.
    budget_rows = max(sub, (BYTE_BUDGET // (width * itemsize)) // sub * sub)
    # Keep >= ~4 grid steps so v7x's two TensorCores both get work and the
    # double-buffer pipeline actually overlaps.
    quarter_rows = _round_up(pl.cdiv(rows, 4), sub)
    block_rows = max(sub, min(budget_rows, quarter_rows))
    if block_rows >= rows:
        block_rows = rows  # full-extent block (always legal)

    grid = (pl.cdiv(rows, block_rows),)

    return pl.pallas_call(
        _lambda_kernel,
        out_shape=jax.ShapeDtypeStruct((rows, width), dtype),
        grid=grid,
        in_specs=[pl.BlockSpec((block_rows, width), lambda i: (i, 0))],
        out_specs=pl.BlockSpec((block_rows, width), lambda i: (i, 0)),
        compiler_params=pltpu.CompilerParams(
            dimension_semantics=("parallel",),
            vmem_limit_bytes=32 * 1024 * 1024,
        ),
    )(x2d)


def lambda_layer(x: jax.Array, *, force_pallas: bool = False) -> jax.Array:
    """Applies the (fixed, elementwise) lambda to x via a tiled Pallas TPU kernel."""
    orig_shape = x.shape
    orig_dtype = x.dtype
    total = x.size

    if total == 0:
        return (x * 2.0 + 1.0).astype(orig_dtype)

    if total < PALLAS_MIN_ELEMS and not force_pallas:
        # Tiny inputs: the fixed pallas_call dispatch + single grid step dominates
        # and the Pallas boundary blocks XLA elementwise fusion.
        return (x * 2.0 + 1.0).astype(orig_dtype)

    width = _pick_width(total)
    if width is not None:
        # Aligned fast path: pure metadata reshape, no extra HBM traffic.
        out2d = _run_pallas_2d(x.reshape(total // width, width))
        return out2d.reshape(orig_shape)

    # Ragged path: kernel on the 128-aligned prefix, plain jnp for the <128 tail.
    aligned = (total // LANES) * LANES
    flat = x.reshape(-1)
    if aligned == 0:
        return (x * 2.0 + 1.0).astype(orig_dtype)
    head = _run_pallas_2d(flat[:aligned].reshape(aligned // LANES, LANES)).reshape(-1)
    tail = (flat[aligned:] * 2.0 + 1.0).astype(orig_dtype)
    return jnp.concatenate([head, tail]).reshape(orig_shape)


if __name__ == "__main__":
    key = jax.random.PRNGKey(0)
    # Small NCHW input consistent with a conv-style module: batch=2, C=4, H=W=16
    x = jax.random.normal(key, (2, 4, 16, 16), dtype=jnp.float32)

    # Default path for this tiny input is the plain-JAX bypass ...
    out_bypass = lambda_layer(x)
    # ... and we also force the Pallas kernel so it is exercised on TPU.
    out_kernel = lambda_layer(x, force_pallas=True)
    jax.block_until_ready((out_bypass, out_kernel))

    ref = x * 2.0 + 1.0
    assert out_bypass.shape == x.shape and out_bypass.dtype == x.dtype
    assert out_kernel.shape == x.shape and out_kernel.dtype == x.dtype
    assert jnp.allclose(out_bypass, ref, atol=1e-6, rtol=1e-6)
    assert jnp.allclose(out_kernel, ref, atol=1e-6, rtol=1e-6)

    # Ragged-size input exercising the aligned-prefix + jnp-tail path.
    x_ragged = jax.random.normal(jax.random.PRNGKey(1), (3, 5, 43), dtype=jnp.float32)
    out_ragged = lambda_layer(x_ragged, force_pallas=True)
    jax.block_until_ready(out_ragged)
    assert out_ragged.shape == x_ragged.shape and out_ragged.dtype == x_ragged.dtype
    assert jnp.allclose(out_ragged, x_ragged * 2.0 + 1.0, atol=1e-6, rtol=1e-6)

    print("KERNEL_OK")
</pallas_src>

<mosaic_0001>
module attributes {stable_mosaic.version = 11 : i64} {
  func.func @_lambda_kernel(%arg0: i32, %arg1: memref<2x1024xf32, #tpu.memory_space<vmem>>, %arg2: memref<2x1024xf32, #tpu.memory_space<vmem>>) attributes {dimension_semantics = [#tpu.dimension_semantics<parallel>], iteration_bounds = array<i64: 1>, scalar_prefetch = 0 : i64, scratch_operands = 0 : i64, tpu.core_type = #tpu.core_type<tc>, window_params = [{transform_indices = @transform_0, window_bounds = array<i64: 2, 1024>}, {transform_indices = @transform_1, window_bounds = array<i64: 2, 1024>}]} {
    %c0 = arith.constant 0 : index
    %c0_0 = arith.constant 0 : index
    %0 = vector.load %arg1[%c0, %c0_0] : memref<2x1024xf32, #tpu.memory_space<vmem>>, vector<2x1024xf32>
    %cst = arith.constant 2.000000e+00 : f32
    %1 = vector.broadcast %cst : f32 to vector<2x1024xf32>
    %2 = arith.mulf %0, %1 : vector<2x1024xf32>
    %cst_1 = arith.constant 1.000000e+00 : f32
    %3 = vector.broadcast %cst_1 : f32 to vector<2x1024xf32>
    %4 = arith.addf %2, %3 : vector<2x1024xf32>
    %c0_2 = arith.constant 0 : index
    %c0_3 = arith.constant 0 : index
    %5 = vector.load %arg2[%c0_2, %c0_3] : memref<2x1024xf32, #tpu.memory_space<vmem>>, vector<2x1024xf32>
    tpu.vector_store %arg2[%c0_2, %c0_3], %4 {strides = array<i32>} : memref<2x1024xf32, #tpu.memory_space<vmem>>, vector<2x1024xf32>,
    return
  }
  func.func @transform_0(%arg0: i32) -> (i32, i32) {
    %c0_i32 = arith.constant 0 : i32
    %c0_i32_0 = arith.constant 0 : i32
    return %arg0, %c0_i32 : i32, i32
  }
  func.func @transform_1(%arg0: i32) -> (i32, i32) {
    %c0_i32 = arith.constant 0 : i32
    %c0_i32_0 = arith.constant 0 : i32
    return %arg0, %c0_i32 : i32, i32
  }
}

</mosaic_0001>

<llo_original>
// kernel: tpu_custom_call.1
$region0: #{tpu_custom_call.1}
  #allocation0 [shape = 'u32[]', space=smem, size = 0x4, offset = 0x4, fixed_abs, tag = 'smem constant byte address 0x4 - core index']
  #allocation1 [shape = 'u32[144,128]{1,0:T(1,128)}', space=vmem, size = 0x12000, scoped, tag = 'internal scratch']
  %s0 = inlined_call_operand.hbm [shape: f32[2,1024], index: 0, kind: input, shape index: {}]
  %s1 = inlined_call_operand.hbm [shape: f32[2,1024], index: 1, kind: output, shape index: {}]
  %s2 = sld [smem:[#allocation0]]
  $region18: #{tpu_custom_call.1} parent=0
    _
  %s4 = ssub.s32 1, %s2
  %s5 = scalar_select 0, %s4, %s2
  $region1: #{tpu_custom_call.1} parent=0
    #allocation2 [shape = 'u8[8192]{0}', space=vmem, size = 0x2000, scoped, tag = 'input window, operand 0, single buffered']
    #allocation3 [shape = 's32[1]{0}', space=sflag, size = 0x4, scoped, tag = 'scoped memory for tpu_custom_call.1']
    #allocation4 [shape = 's32[1]{0}', space=sflag, size = 0x4, scoped, tag = 'scoped memory for tpu_custom_call.1']
    #allocation5 [shape = 'u8[8192]{0}', space=vmem, size = 0x2000, scoped, tag = 'output window, operand 0, single buffered']
    %6 = vsyncpa [#allocation3], 0
    %7 = vsyncpa [#allocation4], 0
    // Predicated region
    $region2: #{tpu_custom_call.1} parent=1 // pred_check
      _
    $region3: #{tpu_custom_call.1} parent=1 // pred_check_branch
      %9 = sbr.rel (0) target = $region5
    $region4: #{tpu_custom_call.1} parent=1 // pred_region
      %s11 = ssub.s32 256, 256
      %12 = vsyncadd [#allocation3], %s11
      %s14 = sshll.u32 [#allocation2], 4
      %s15 = int_to_ptr.vmem [resolvable:$true] %s14
      %17 = dma.hbm_to_vmem [thread:$0]  %s0, 256, %s15, [#allocation3]
    $region5: #{tpu_custom_call.1} parent=1 // pred_fallthru
      _
    // Predicated region
    $region6: #{tpu_custom_call.1} parent=1 // pred_check
      _
    $region7: #{tpu_custom_call.1} parent=1 // pred_check_branch
      %19 = sbr.rel (0) target = $region9
    $region8: #{tpu_custom_call.1} parent=1 // pred_region
      %20 = dma.done [#allocation3], 256
    $region9: #{tpu_custom_call.1} parent=1 // pred_fallthru
      _
    %v21 = vld [vmem:[#allocation2] sm:$0xff]
    %v22 = vld [vmem:[#allocation2 + $0x8] sm:$0xff]
    %v23 = vmul.f32 %v21, 2.0
    %v24 = vmul.f32 %v22, 2.0
    %v25 = vadd.f32 %v23, 1.0
    %v26 = vadd.f32 %v24, 1.0
    %27 = vst [vmem:[#allocation5] sm:$0xff] %v25
    %28 = vst [vmem:[#allocation5 + $0x8] sm:$0xff] %v26
    // Predicated region
    $region10: #{tpu_custom_call.1} parent=1 // pred_check
      _
    $region11: #{tpu_custom_call.1} parent=1 // pred_check_branch
      %30 = sbr.rel (0) target = $region13
    $region12: #{tpu_custom_call.1} parent=1 // pred_region
      %s32 = ssub.s32 256, 256
      %33 = vsyncadd [#allocation4], %s32
      %s35 = sshll.u32 [#allocation5], 4
      %s36 = int_to_ptr.vmem [resolvable:$true] %s35
      %38 = dma.vmem_to_hbm [thread:$0]  %s36, 256, %s1, [#allocation4]
    $region13: #{tpu_custom_call.1} parent=1 // pred_fallthru
      _
    // Predicated region
    $region14: #{tpu_custom_call.1} parent=1 // pred_check
      _
    $region15: #{tpu_custom_call.1} parent=1 // pred_check_branch
      %40 = sbr.rel (0) target = $region17
    $region16: #{tpu_custom_call.1} parent=1 // pred_region
      %41 = dma.done [#allocation4], 256
    $region17: #{tpu_custom_call.1} parent=1 // pred_fallthru
      _
    %42 = vsyncpa [#allocation3], 1
    %43 = vsyncpa [#allocation4], 1

</llo_original>
